<compile_context>
chip_gen: v6e
topology: v6e:2x2x1
jax: 0.10.0
libtpu: 0.0.40
codegen_flags: <defaults>
</compile_context>

<pallas_src>
import functools

import jax
import jax.numpy as jnp
from jax.experimental import pallas as pl
from jax.experimental.pallas import tpu as pltpu


def _round_up(x, m):
    return (x + m - 1) // m * m


def _value_mlp_kernel(x_ref, w1_ref, b1_ref, w2_ref, b2_ref,
                      w3_ref, b3_ref, w4_ref, b4_ref, o_ref,
                      *, negative_slope):
    """One batch tile of the 4-layer MLP.

    fc1-fc3 run on the MXU with f32 accumulation; biases/activations in f32.
    fc4 (H -> 1) is a VPU multiply + lane reduction (an N=1 matmul would waste
    the MXU and pay full push/pop latency).
    """
    cd = w1_ref.dtype                       # MXU input dtype (bf16 or f32)

    def act(h):
        if negative_slope == 0.0:
            return jnp.maximum(h, 0.0)
        return jnp.maximum(h, negative_slope * h)   # LeakyReLU(negative_slope)

    x = x_ref[...].astype(cd)                                           # (TB, Din)

    h = jnp.dot(x, w1_ref[...], preferred_element_type=jnp.float32)     # (TB, H)
    h = act(h + b1_ref[...])

    h = jnp.dot(h.astype(cd), w2_ref[...], preferred_element_type=jnp.float32)
    h = act(h + b2_ref[...])

    h = jnp.dot(h.astype(cd), w3_ref[...], preferred_element_type=jnp.float32)
    h = act(h + b3_ref[...])

    # fc4: y = h @ w4 + b4, with w4 stored as a (1, H) row -> VPU mul + XLU
    # lane-reduce, both off the MXU.
    w4r = w4_ref[...].astype(jnp.float32)                               # (1, H)
    y = jnp.sum(h * w4r, axis=-1, keepdims=True)                        # (TB, 1)
    o_ref[...] = (y + b4_ref[...]).astype(o_ref.dtype)


@functools.partial(
    jax.jit, static_argnames=("block_b_max", "compute_dtype", "activation"))
def value_network_forward(x, params, *, block_b_max=512,
                          compute_dtype=jnp.bfloat16, activation="relu"):
    """Pallas forward for ValueNetwork.  x: (B, in_dim) f32 -> (B,) f32."""
    w1, b1, w2, b2, w3, b3, w4, b4 = params
    B, in_dim = x.shape
    H = w1.shape[1]

    if activation == "relu":
        negative_slope = 0.0
    elif activation == "l_relu":
        negative_slope = 0.1
    else:
        raise NotImplementedError(activation)

    cd = jnp.dtype(compute_dtype)

    # ---- host-side padding so every vld / vmatmul is full-width -------------
    din_p = _round_up(max(in_dim, 128), 128)           # lane-align input dim
    block_b_max = max(8, _round_up(block_b_max, 8))
    block_b = min(_round_up(B, 8), block_b_max)        # large MXU-row batch tile
    b_pad = _round_up(B, block_b)

    if din_p != in_dim:
        x = jnp.pad(x, ((0, 0), (0, din_p - in_dim)))
        w1 = jnp.pad(w1, ((0, din_p - in_dim), (0, 0)))
    if b_pad != B:
        x = jnp.pad(x, ((0, b_pad - B), (0, 0)))

    # bf16 (or f32) MXU inputs; f32 accumulation happens inside the kernel.
    x = x.astype(cd)
    w1, w2, w3 = (w.astype(cd) for w in (w1, w2, w3))
    w4r = w4.reshape(1, H).astype(cd)                  # fc4 weight as a row
    b1, b2, b3 = (b.astype(jnp.float32) for b in (b1, b2, b3))
    b4 = b4.reshape(1, 1).astype(jnp.float32)

    grid = (b_pad // block_b,)

    # Constant index maps: weight/bias blocks are fetched once and stay
    # VMEM-resident across the batch-tile iterations.
    full = lambda shape: pl.BlockSpec(shape, lambda i: tuple(0 for _ in shape))

    kernel = functools.partial(_value_mlp_kernel, negative_slope=negative_slope)

    wdt = cd.itemsize
    flops = 2 * b_pad * (din_p * H + 2 * H * H + H)
    bytes_accessed = (b_pad * din_p * wdt                    # x
                      + (din_p * H + 2 * H * H + H) * wdt    # weights
                      + (3 * H + 1) * 4                      # biases
                      + b_pad * 4)                           # y
    # Per-step VMEM need (pipeline double-buffers the inputs) plus headroom for
    # the f32 intermediates; capped at 64 MiB to stay within v7x physical VMEM.
    vmem_need = (2 * ((block_b * din_p + din_p * H + 2 * H * H + H) * wdt
                      + (3 * H + 1) * 4 + block_b * 4)
                 + 4 * block_b * H * 4)
    vmem_limit = int(min(max(vmem_need, 32 * 1024 * 1024), 64 * 1024 * 1024))

    out = pl.pallas_call(
        kernel,
        out_shape=jax.ShapeDtypeStruct((b_pad, 1), jnp.float32),
        grid_spec=pltpu.PrefetchScalarGridSpec(
            num_scalar_prefetch=0,
            grid=grid,
            in_specs=[
                pl.BlockSpec((block_b, din_p), lambda i: (i, 0)),   # x tile
                full(w1.shape), full(b1.shape),
                full(w2.shape), full(b2.shape),
                full(w3.shape), full(b3.shape),
                full(w4r.shape), full(b4.shape),
            ],
            out_specs=pl.BlockSpec((block_b, 1), lambda i: (i, 0)),
        ),
        compiler_params=pltpu.CompilerParams(
            dimension_semantics=("parallel",),     # batch axis shardable (v7x 2 TCs)
            vmem_limit_bytes=vmem_limit),
        cost_estimate=pl.CostEstimate(
            flops=flops, transcendentals=0, bytes_accessed=bytes_accessed),
    )(x, w1, b1, w2, b2, w3, b3, w4r, b4)

    return out[:B, 0]   # drop batch padding, .squeeze(1)


def init_params(key, in_dim=256, scale_up_ratio=1):
    """Deterministic init mimicking PyTorch Linear default (U[-1/sqrt(fan_in), +]).

    Weights stored transposed vs. PyTorch: (in_features, out_features)."""
    H = 256 * scale_up_ratio
    dims = [(in_dim, H), (H, H), (H, H), (H, 1)]
    params = []
    for (fan_in, fan_out) in dims:
        key, kw, kb = jax.random.split(key, 3)
        bound = 1.0 / jnp.sqrt(jnp.float32(fan_in))
        w = jax.random.uniform(kw, (fan_in, fan_out), jnp.float32, -bound, bound)
        b = jax.random.uniform(kb, (1, fan_out), jnp.float32, -bound, bound)
        params += [w, b]
    return tuple(params)


def _reference_forward(x, params):
    w1, b1, w2, b2, w3, b3, w4, b4 = params
    h = jnp.maximum(x @ w1 + b1, 0.0)
    h = jnp.maximum(h @ w2 + b2, 0.0)
    h = jnp.maximum(h @ w3 + b3, 0.0)
    return (h @ w4 + b4)[:, 0]


if __name__ == "__main__":
    key = jax.random.PRNGKey(0)
    in_dim = 256
    B = 10          # deliberately not a multiple of 8 -> exercises batch padding

    kp, kx = jax.random.split(key)
    params = init_params(kp, in_dim=in_dim, scale_up_ratio=1)
    x = jax.random.normal(kx, (B, in_dim), jnp.float32)

    y_ref = _reference_forward(x, params)

    # f32 MXU path: strict agreement with the plain-JAX/PyTorch-style reference.
    y32 = jax.block_until_ready(
        value_network_forward(x, params, compute_dtype=jnp.float32))
    assert y32.shape == (B,)
    assert jnp.allclose(y32, y_ref, atol=2e-3, rtol=2e-3), \
        float(jnp.max(jnp.abs(y32 - y_ref)))

    # bf16 MXU path (f32 accumulation): ~2x MXU throughput, looser tolerance.
    ybf = jax.block_until_ready(
        value_network_forward(x, params, compute_dtype=jnp.bfloat16))
    assert ybf.shape == (B,)
    assert jnp.allclose(ybf, y_ref, atol=5e-2, rtol=5e-2), \
        float(jnp.max(jnp.abs(ybf - y_ref)))

    print("KERNEL_OK")
</pallas_src>

<mosaic_0001>
module attributes {stable_mosaic.version = 11 : i64} {
  func.func @_value_mlp_kernel(%arg0: i32, %arg1: memref<16x256xf32, #tpu.memory_space<vmem>>, %arg2: memref<256x256xf32, #tpu.memory_space<vmem>>, %arg3: memref<1x256xf32, #tpu.memory_space<vmem>>, %arg4: memref<256x256xf32, #tpu.memory_space<vmem>>, %arg5: memref<1x256xf32, #tpu.memory_space<vmem>>, %arg6: memref<256x256xf32, #tpu.memory_space<vmem>>, %arg7: memref<1x256xf32, #tpu.memory_space<vmem>>, %arg8: memref<1x256xf32, #tpu.memory_space<vmem>>, %arg9: memref<1x1xf32, #tpu.memory_space<vmem>>, %arg10: memref<16x1xf32, #tpu.memory_space<vmem>>) attributes {dimension_semantics = [#tpu.dimension_semantics<parallel>], iteration_bounds = array<i64: 1>, scalar_prefetch = 0 : i64, scratch_operands = 0 : i64, tpu.core_type = #tpu.core_type<tc>, window_params = [{transform_indices = @transform_0, window_bounds = array<i64: 16, 256>}, {pipeline_mode = #tpu.pipeline_mode<synchronous>, transform_indices = @transform_1, window_bounds = array<i64: 256, 256>}, {pipeline_mode = #tpu.pipeline_mode<synchronous>, transform_indices = @transform_2, window_bounds = array<i64: 1, 256>}, {pipeline_mode = #tpu.pipeline_mode<synchronous>, transform_indices = @transform_3, window_bounds = array<i64: 256, 256>}, {pipeline_mode = #tpu.pipeline_mode<synchronous>, transform_indices = @transform_4, window_bounds = array<i64: 1, 256>}, {pipeline_mode = #tpu.pipeline_mode<synchronous>, transform_indices = @transform_5, window_bounds = array<i64: 256, 256>}, {pipeline_mode = #tpu.pipeline_mode<synchronous>, transform_indices = @transform_6, window_bounds = array<i64: 1, 256>}, {pipeline_mode = #tpu.pipeline_mode<synchronous>, transform_indices = @transform_7, window_bounds = array<i64: 1, 256>}, {pipeline_mode = #tpu.pipeline_mode<synchronous>, transform_indices = @transform_8, window_bounds = array<i64: 1, 1>}, {transform_indices = @transform_9, window_bounds = array<i64: 16, 1>}]} {
    %c0 = arith.constant 0 : index
    %c0_0 = arith.constant 0 : index
    %0 = vector.load %arg1[%c0, %c0_0] : memref<16x256xf32, #tpu.memory_space<vmem>>, vector<16x256xf32>
    %c0_1 = arith.constant 0 : index
    %c0_2 = arith.constant 0 : index
    %1 = vector.load %arg2[%c0_1, %c0_2] : memref<256x256xf32, #tpu.memory_space<vmem>>, vector<256x256xf32>
    %cst = arith.constant dense<0.000000e+00> : vector<16x256xf32>
    %2 = tpu.matmul %0, %1, %cst {dimension_numbers = #tpu.dot_dimension_numbers<[1], [0], [0], [1], [0, 0, 1, 1], [], []>} : vector<16x256xf32>, vector<256x256xf32>, vector<16x256xf32> -> vector<16x256xf32>
    %c0_3 = arith.constant 0 : index
    %c0_4 = arith.constant 0 : index
    %3 = vector.load %arg3[%c0_3, %c0_4] : memref<1x256xf32, #tpu.memory_space<vmem>>, vector<1x256xf32>
    %4 = vector.broadcast %3 : vector<1x256xf32> to vector<16x256xf32>
    %5 = arith.addf %2, %4 : vector<16x256xf32>
    %cst_5 = arith.constant 0.000000e+00 : f32
    %6 = vector.broadcast %cst_5 : f32 to vector<16x256xf32>
    %7 = arith.maximumf %5, %6 : vector<16x256xf32>
    %c0_6 = arith.constant 0 : index
    %c0_7 = arith.constant 0 : index
    %8 = vector.load %arg4[%c0_6, %c0_7] : memref<256x256xf32, #tpu.memory_space<vmem>>, vector<256x256xf32>
    %cst_8 = arith.constant dense<0.000000e+00> : vector<16x256xf32>
    %9 = tpu.matmul %7, %8, %cst_8 {dimension_numbers = #tpu.dot_dimension_numbers<[1], [0], [0], [1], [0, 0, 1, 1], [], []>} : vector<16x256xf32>, vector<256x256xf32>, vector<16x256xf32> -> vector<16x256xf32>
    %c0_9 = arith.constant 0 : index
    %c0_10 = arith.constant 0 : index
    %10 = vector.load %arg5[%c0_9, %c0_10] : memref<1x256xf32, #tpu.memory_space<vmem>>, vector<1x256xf32>
    %11 = vector.broadcast %10 : vector<1x256xf32> to vector<16x256xf32>
    %12 = arith.addf %9, %11 : vector<16x256xf32>
    %cst_11 = arith.constant 0.000000e+00 : f32
    %13 = vector.broadcast %cst_11 : f32 to vector<16x256xf32>
    %14 = arith.maximumf %12, %13 : vector<16x256xf32>
    %c0_12 = arith.constant 0 : index
    %c0_13 = arith.constant 0 : index
    %15 = vector.load %arg6[%c0_12, %c0_13] : memref<256x256xf32, #tpu.memory_space<vmem>>, vector<256x256xf32>
    %cst_14 = arith.constant dense<0.000000e+00> : vector<16x256xf32>
    %16 = tpu.matmul %14, %15, %cst_14 {dimension_numbers = #tpu.dot_dimension_numbers<[1], [0], [0], [1], [0, 0, 1, 1], [], []>} : vector<16x256xf32>, vector<256x256xf32>, vector<16x256xf32> -> vector<16x256xf32>
    %c0_15 = arith.constant 0 : index
    %c0_16 = arith.constant 0 : index
    %17 = vector.load %arg7[%c0_15, %c0_16] : memref<1x256xf32, #tpu.memory_space<vmem>>, vector<1x256xf32>
    %18 = vector.broadcast %17 : vector<1x256xf32> to vector<16x256xf32>
    %19 = arith.addf %16, %18 : vector<16x256xf32>
    %cst_17 = arith.constant 0.000000e+00 : f32
    %20 = vector.broadcast %cst_17 : f32 to vector<16x256xf32>
    %21 = arith.maximumf %19, %20 : vector<16x256xf32>
    %c0_18 = arith.constant 0 : index
    %c0_19 = arith.constant 0 : index
    %22 = vector.load %arg8[%c0_18, %c0_19] : memref<1x256xf32, #tpu.memory_space<vmem>>, vector<1x256xf32>
    %23 = vector.broadcast %22 : vector<1x256xf32> to vector<16x256xf32>
    %24 = arith.mulf %21, %23 : vector<16x256xf32>
    %cst_20 = arith.constant dense<0.000000e+00> : vector<16xf32>
    %25 = vector.multi_reduction <add>, %24, %cst_20 [1] : vector<16x256xf32> to vector<16xf32>
    %26 = vector.shape_cast %25 : vector<16xf32> to vector<16x1xf32>
    %c0_21 = arith.constant 0 : index
    %c0_22 = arith.constant 0 : index
    %27 = vector.load %arg9[%c0_21, %c0_22] : memref<1x1xf32, #tpu.memory_space<vmem>>, vector<1x1xf32>
    %28 = vector.broadcast %27 : vector<1x1xf32> to vector<16x1xf32>
    %29 = arith.addf %26, %28 : vector<16x1xf32>
    %c0_23 = arith.constant 0 : index
    %c0_24 = arith.constant 0 : index
    %30 = vector.load %arg10[%c0_23, %c0_24] : memref<16x1xf32, #tpu.memory_space<vmem>>, vector<16x1xf32>
    tpu.vector_store %arg10[%c0_23, %c0_24], %29 {strides = array<i32>} : memref<16x1xf32, #tpu.memory_space<vmem>>, vector<16x1xf32>,
    return
  }
  func.func @transform_0(%arg0: i32) -> (i32, i32) {
    %c0_i32 = arith.constant 0 : i32
    %c0_i32_0 = arith.constant 0 : i32
    return %arg0, %c0_i32 : i32, i32
  }
  func.func @transform_1(%arg0: i32) -> (i32, i32) {
    %c0_i32 = arith.constant 0 : i32
    %c0_i32_0 = arith.constant 0 : i32
    %c0_i32_1 = arith.constant 0 : i32
    return %c0_i32, %c0_i32_0 : i32, i32
  }
  func.func @transform_2(%arg0: i32) -> (i32, i32) {
    %c0_i32 = arith.constant 0 : i32
    %c0_i32_0 = arith.constant 0 : i32
    %c0_i32_1 = arith.constant 0 : i32
    return %c0_i32, %c0_i32_0 : i32, i32
  }
  func.func @transform_3(%arg0: i32) -> (i32, i32) {
    %c0_i32 = arith.constant 0 : i32
    %c0_i32_0 = arith.constant 0 : i32
    %c0_i32_1 = arith.constant 0 : i32
    return %c0_i32, %c0_i32_0 : i32, i32
  }
  func.func @transform_4(%arg0: i32) -> (i32, i32) {
    %c0_i32 = arith.constant 0 : i32
    %c0_i32_0 = arith.constant 0 : i32
    %c0_i32_1 = arith.constant 0 : i32
    return %c0_i32, %c0_i32_0 : i32, i32
  }
  func.func @transform_5(%arg0: i32) -> (i32, i32) {
    %c0_i32 = arith.constant 0 : i32
    %c0_i32_0 = arith.constant 0 : i32
    %c0_i32_1 = arith.constant 0 : i32
    return %c0_i32, %c0_i32_0 : i32, i32
  }
  func.func @transform_6(%arg0: i32) -> (i32, i32) {
    %c0_i32 = arith.constant 0 : i32
    %c0_i32_0 = arith.constant 0 : i32
    %c0_i32_1 = arith.constant 0 : i32
    return %c0_i32, %c0_i32_0 : i32, i32
  }
  func.func @transform_7(%arg0: i32) -> (i32, i32) {
    %c0_i32 = arith.constant 0 : i32
    %c0_i32_0 = arith.constant 0 : i32
    %c0_i32_1 = arith.constant 0 : i32
    return %c0_i32, %c0_i32_0 : i32, i32
  }
  func.func @transform_8(%arg0: i32) -> (i32, i32) {
    %c0_i32 = arith.constant 0 : i32
    %c0_i32_0 = arith.constant 0 : i32
    %c0_i32_1 = arith.constant 0 : i32
    return %c0_i32, %c0_i32_0 : i32, i32
  }
  func.func @transform_9(%arg0: i32) -> (i32, i32) {
    %c0_i32 = arith.constant 0 : i32
    %c0_i32_0 = arith.constant 0 : i32
    return %arg0, %c0_i32 : i32, i32
  }
}

</mosaic_0001>

<llo_original>
// kernel: value_network_forward.1
$region0: #{value_network_forward.1}
  #allocation0 [shape = 'u32[]', space=smem, size = 0x4, offset = 0x4, fixed_abs, tag = 'smem constant byte address 0x4 - core index']
  #allocation1 [shape = 'u32[144,128]{1,0:T(1,128)}', space=vmem, size = 0x12000, scoped, tag = 'internal scratch']
  #allocation2 [shape = 'f32[1,1]{1,0:T(1,128)S(1)}', space=vmem, size = 0x200, scoped, tag = 'scoped memory for value_network_forward.1']
  %s0 = inlined_call_operand.vmem [shape: f32[16,256], index: 0, kind: input, shape index: {}]
  %s1 = inlined_call_operand.hbm [shape: f32[256,256], index: 1, kind: input, shape index: {}]
  %s2 = inlined_call_operand.vmem [shape: f32[1,256], index: 2, kind: input, shape index: {}]
  %s3 = inlined_call_operand.hbm [shape: f32[256,256], index: 3, kind: input, shape index: {}]
  %s4 = inlined_call_operand.vmem [shape: f32[1,256], index: 4, kind: input, shape index: {}]
  %s5 = inlined_call_operand.hbm [shape: f32[256,256], index: 5, kind: input, shape index: {}]
  %s6 = inlined_call_operand.vmem [shape: f32[1,256], index: 6, kind: input, shape index: {}]
  %s7 = inlined_call_operand.vmem [shape: f32[1,256], index: 7, kind: input, shape index: {}]
  %s8 = inlined_call_operand.<no memory space> [shape: f32[1,1], index: 8, kind: input, shape index: {}]
  %s9 = inlined_call_operand.vmem [shape: f32[16,1], index: 9, kind: output, shape index: {}]
  %s10 = sld [smem:[#allocation0]]
  $region58: #{value_network_forward.1} parent=0
    _
  %s12 = ssub.s32 1, %s10
  %s13 = scalar_select 0, %s12, %s10
  %v14 = vstv %s8
  %15 = vst [vmem:[#allocation2] sm:$0x1] %v14
  $region1: #{value_network_forward.1} parent=0
    #allocation3 [shape = 'u8[262144]{0}', space=vmem, size = 0x40000, scoped, tag = 'input window, operand 1, single buffered']
    #allocation4 [shape = 's32[1]{0}', space=sflag, size = 0x4, scoped, tag = 'scoped memory for value_network_forward.1']
    #allocation5 [shape = 'u8[262144]{0}', space=vmem, size = 0x40000, scoped, tag = 'input window, operand 3, single buffered']
    #allocation6 [shape = 's32[1]{0}', space=sflag, size = 0x4, scoped, tag = 'scoped memory for value_network_forward.1']
    #allocation7 [shape = 'u8[262144]{0}', space=vmem, size = 0x40000, scoped, tag = 'input window, operand 5, single buffered']
    %16 = vsyncpa [#allocation4], 0
    %17 = vsyncpa [#allocation6], 0
    // Predicated region
    $region2: #{value_network_forward.1} parent=1 // pred_check
      _
    $region3: #{value_network_forward.1} parent=1 // pred_check_branch
      %19 = sbr.rel (0) target = $region5
    $region4: #{value_network_forward.1} parent=1 // pred_region
      _
    $region5: #{value_network_forward.1} parent=1 // pred_fallthru
      _
    // Predicated region
    $region6: #{value_network_forward.1} parent=1 // pred_check
      _
    $region7: #{value_network_forward.1} parent=1 // pred_check_branch
      %21 = sbr.rel (0) target = $region9
    $region8: #{value_network_forward.1} parent=1 // pred_region
      %s23 = ssub.s32 8192, 8192
      %24 = vsyncadd [#allocation4], %s23
      %s25 = sshll.u32 [#allocation3], 4
      %s26 = int_to_ptr.vmem [resolvable:$true] %s25
      %31 = dma.hbm_to_vmem [thread:$0]  %s1, 8192, %s26, [#allocation4], 256, 256, 16
    $region9: #{value_network_forward.1} parent=1 // pred_fallthru
      _
    // Predicated region
    $region10: #{value_network_forward.1} parent=1 // pred_check
      _
    $region11: #{value_network_forward.1} parent=1 // pred_check_branch
      %33 = sbr.rel (0) target = $region13
    $region12: #{value_network_forward.1} parent=1 // pred_region
      _
    $region13: #{value_network_forward.1} parent=1 // pred_fallthru
      _
    // Predicated region
    $region14: #{value_network_forward.1} parent=1 // pred_check
      _
    $region15: #{value_network_forward.1} parent=1 // pred_check_branch
      %35 = sbr.rel (0) target = $region17
    $region16: #{value_network_forward.1} parent=1 // pred_region
      %s37 = ssub.s32 8192, 8192
      %38 = vsyncadd [#allocation6], %s37
      %s39 = sshll.u32 [#allocation5], 4
      %s40 = int_to_ptr.vmem [resolvable:$true] %s39
      %45 = dma.hbm_to_vmem [thread:$0]  %s3, 8192, %s40, [#allocation6], 256, 256, 16
    $region17: #{value_network_forward.1} parent=1 // pred_fallthru
      _
    // Predicated region
    $region18: #{value_network_forward.1} parent=1 // pred_check
      _
    $region19: #{value_network_forward.1} parent=1 // pred_check_branch
      %47 = sbr.rel (0) target = $region21
    $region20: #{value_network_forward.1} parent=1 // pred_region
      _
    $region21: #{value_network_forward.1} parent=1 // pred_fallthru
      _
    // Predicated region
    $region22: #{value_network_forward.1} parent=1 // pred_check
      _
    $region23: #{value_network_forward.1} parent=1 // pred_check_branch
      %49 = sbr.rel (0) target = $region25
    $region24: #{value_network_forward.1} parent=1 // pred_region
      %s51 = ssub.s32 8192, 8192
      %52 = vsyncadd [#allocation6], %s51
      %s53 = sshll.u32 [#allocation7], 4
      %s54 = int_to_ptr.vmem [resolvable:$true] %s53
      %59 = dma.hbm_to_vmem [thread:$0]  %s5, 8192, %s54, [#allocation6], 256, 256, 16
    $region25: #{value_network_forward.1} parent=1 // pred_fallthru
      _
    // Predicated region
    $region26: #{value_network_forward.1} parent=1 // pred_check
      _
    $region27: #{value_network_forward.1} parent=1 // pred_check_branch
      %61 = sbr.rel (0) target = $region29
    $region28: #{value_network_forward.1} parent=1 // pred_region
      _
    $region29: #{value_network_forward.1} parent=1 // pred_fallthru
      _
    // Predicated region
    $region30: #{value_network_forward.1} parent=1 // pred_check
      _
    $region31: #{value_network_forward.1} parent=1 // pred_check_branch
      %63 = sbr.rel (0) target = $region33
    $region32: #{value_network_forward.1} parent=1 // pred_region
      _
    $region33: #{value_network_forward.1} parent=1 // pred_fallthru
      _
    // Predicated region
    $region34: #{value_network_forward.1} parent=1 // pred_check
      _
    $region35: #{value_network_forward.1} parent=1 // pred_check_branch
      %65 = sbr.rel (0) target = $region37
    $region36: #{value_network_forward.1} parent=1 // pred_region
      _
    $region37: #{value_network_forward.1} parent=1 // pred_fallthru
      _
    // Predicated region
    $region38: #{value_network_forward.1} parent=1 // pred_check
      _
    $region39: #{value_network_forward.1} parent=1 // pred_check_branch
      %67 = sbr.rel (0) target = $region41
    $region40: #{value_network_forward.1} parent=1 // pred_region
      %68 = dma.done [#allocation4], 8192
    $region41: #{value_network_forward.1} parent=1 // pred_fallthru
      _
    // Predicated region
    $region42: #{value_network_forward.1} parent=1 // pred_check
      _
    $region43: #{value_network_forward.1} parent=1 // pred_check_branch
      %70 = sbr.rel (0) target = $region45
    $region44: #{value_network_forward.1} parent=1 // pred_region
      %71 = dma.done [#allocation6], 8192
    $region45: #{value_network_forward.1} parent=1 // pred_fallthru
      _
    // Predicated region
    $region46: #{value_network_forward.1} parent=1 // pred_check
      _
    $region47: #{value_network_forward.1} parent=1 // pred_check_branch
      %73 = sbr.rel (0) target = $region49
    $region48: #{value_network_forward.1} parent=1 // pred_region
      %74 = dma.done [#allocation6], 8192
    $region49: #{value_network_forward.1} parent=1 // pred_fallthru
      _
    %v75 = vld [vmem:[%s0] sm:$0xff]
    %v76 = vld [vmem:[%s0 + $0x8] sm:$0xff]
    %v77 = vld [vmem:[%s0 + $0x10] sm:$0xff]
    %v78 = vld [vmem:[%s0 + $0x18] sm:$0xff]
    %v79 = vld [vmem:[#allocation3] sm:$0xff]
    %v80 = vld [vmem:[#allocation3 + $0x8] sm:$0xff]
    %v81 = vld [vmem:[#allocation3 + $0x10] sm:$0xff]
    %v82 = vld [vmem:[#allocation3 + $0x18] sm:$0xff]
    %v83 = vld [vmem:[#allocation3 + $0x20] sm:$0xff]
    %v84 = vld [vmem:[#allocation3 + $0x28] sm:$0xff]
    %v85 = vld [vmem:[#allocation3 + $0x30] sm:$0xff]
    %v86 = vld [vmem:[#allocation3 + $0x38] sm:$0xff]
    %v87 = vld [vmem:[#allocation3 + $0x40] sm:$0xff]
    %v88 = vld [vmem:[#allocation3 + $0x48] sm:$0xff]
    %v89 = vld [vmem:[#allocation3 + $0x50] sm:$0xff]
    %v90 = vld [vmem:[#allocation3 + $0x58] sm:$0xff]
    %v91 = vld [vmem:[#allocation3 + $0x60] sm:$0xff]
    %v92 = vld [vmem:[#allocation3 + $0x68] sm:$0xff]
    %v93 = vld [vmem:[#allocation3 + $0x70] sm:$0xff]
    %v94 = vld [vmem:[#allocation3 + $0x78] sm:$0xff]
    %v95 = vld [vmem:[#allocation3 + $0x80] sm:$0xff]
    %v96 = vld [vmem:[#allocation3 + $0x88] sm:$0xff]
    %v97 = vld [vmem:[#allocation3 + $0x90] sm:$0xff]
    %v98 = vld [vmem:[#allocation3 + $0x98] sm:$0xff]
    %v99 = vld [vmem:[#allocation3 + $0xa0] sm:$0xff]
    %v100 = vld [vmem:[#allocation3 + $0xa8] sm:$0xff]
    %v101 = vld [vmem:[#allocation3 + $0xb0] sm:$0xff]
    %v102 = vld [vmem:[#allocation3 + $0xb8] sm:$0xff]
    %v103 = vld [vmem:[#allocation3 + $0xc0] sm:$0xff]
    %v104 = vld [vmem:[#allocation3 + $0xc8] sm:$0xff]
    %v105 = vld [vmem:[#allocation3 + $0xd0] sm:$0xff]
    %v106 = vld [vmem:[#allocation3 + $0xd8] sm:$0xff]
    %v107 = vld [vmem:[#allocation3 + $0xe0] sm:$0xff]
    %v108 = vld [vmem:[#allocation3 + $0xe8] sm:$0xff]
    %v109 = vld [vmem:[#allocation3 + $0xf0] sm:$0xff]
    %v110 = vld [vmem:[#allocation3 + $0xf8] sm:$0xff]
    %v111 = vld [vmem:[#allocation3 + $0x100] sm:$0xff]
    %v112 = vld [vmem:[#allocation3 + $0x108] sm:$0xff]
    %v113 = vld [vmem:[#allocation3 + $0x110] sm:$0xff]
    %v114 = vld [vmem:[#allocation3 + $0x118] sm:$0xff]
    %v115 = vld [vmem:[#allocation3 + $0x120] sm:$0xff]
    %v116 = vld [vmem:[#allocation3 + $0x128] sm:$0xff]
    %v117 = vld [vmem:[#allocation3 + $0x130] sm:$0xff]
    %v118 = vld [vmem:[#allocation3 + $0x138] sm:$0xff]
    %v119 = vld [vmem:[#allocation3 + $0x140] sm:$0xff]
    %v120 = vld [vmem:[#allocation3 + $0x148] sm:$0xff]
    %v121 = vld [vmem:[#allocation3 + $0x150] sm:$0xff]
    %v122 = vld [vmem:[#allocation3 + $0x158] sm:$0xff]
    %v123 = vld [vmem:[#allocation3 + $0x160] sm:$0xff]
    %v124 = vld [vmem:[#allocation3 + $0x168] sm:$0xff]
    %v125 = vld [vmem:[#allocation3 + $0x170] sm:$0xff]
    %v126 = vld [vmem:[#allocation3 + $0x178] sm:$0xff]
    %v127 = vld [vmem:[#allocation3 + $0x180] sm:$0xff]
    %v128 = vld [vmem:[#allocation3 + $0x188] sm:$0xff]
    %v129 = vld [vmem:[#allocation3 + $0x190] sm:$0xff]
    %v130 = vld [vmem:[#allocation3 + $0x198] sm:$0xff]
    %v131 = vld [vmem:[#allocation3 + $0x1a0] sm:$0xff]
    %v132 = vld [vmem:[#allocation3 + $0x1a8] sm:$0xff]
    %v133 = vld [vmem:[#allocation3 + $0x1b0] sm:$0xff]
    %v134 = vld [vmem:[#allocation3 + $0x1b8] sm:$0xff]
    %v135 = vld [vmem:[#allocation3 + $0x1c0] sm:$0xff]
    %v136 = vld [vmem:[#allocation3 + $0x1c8] sm:$0xff]
    %v137 = vld [vmem:[#allocation3 + $0x1d0] sm:$0xff]
    %v138 = vld [vmem:[#allocation3 + $0x1d8] sm:$0xff]
    %v139 = vld [vmem:[#allocation3 + $0x1e0] sm:$0xff]
    %v140 = vld [vmem:[#allocation3 + $0x1e8] sm:$0xff]
    %v141 = vld [vmem:[#allocation3 + $0x1f0] sm:$0xff]
    %v142 = vld [vmem:[#allocation3 + $0x1f8] sm:$0xff]
    %v143 = vld [vmem:[%s2] sm:$0x3]
    %v145 = vlaneseq
    %v146 = vshrl.u32 %v145, 7
    %v147 = vsub.s32 0, %v146
    %v148 = vrot.slane %v143, %v147
    %v149 = vlaneseq
    %v150 = vshrl.u32 %v149, 7
    %v151 = vsub.s32 1, %v150
    %v152 = vrot.slane %v143, %v151
    %155 = vmatprep.subr.mxu0 %v110
    %156 = vmatpush1.msra.mxu0 %v109
    %157 = vmatprep.subr.mxu0 %v108
    %158 = vmatpush1.msra.mxu0 %v107
    %159 = vmatprep.subr.mxu0 %v106
    %160 = vmatpush1.msra.mxu0 %v105
    %161 = vmatprep.subr.mxu0 %v104
    %162 = vmatpush1.msra.mxu0 %v103
    %163 = vmatprep.subr.mxu0 %v102
    %164 = vmatpush1.msra.mxu0 %v101
    %165 = vmatprep.subr.mxu0 %v100
    %166 = vmatpush1.msra.mxu0 %v99
    %167 = vmatprep.subr.mxu0 %v98
    %168 = vmatpush1.msra.mxu0 %v97
    %169 = vmatprep.subr.mxu0 %v96
    %170 = vmatpush1.msra.mxu0 %v95
    %171 = vmatprep.subr.mxu0 %v94
    %172 = vmatpush1.msra.mxu0 %v93
    %173 = vmatprep.subr.mxu0 %v92
    %174 = vmatpush1.msra.mxu0 %v91
    %175 = vmatprep.subr.mxu0 %v90
    %176 = vmatpush1.msra.mxu0 %v89
    %177 = vmatprep.subr.mxu0 %v88
    %178 = vmatpush1.msra.mxu0 %v87
    %179 = vmatprep.subr.mxu0 %v86
    %180 = vmatpush1.msra.mxu0 %v85
    %181 = vmatprep.subr.mxu0 %v84
    %182 = vmatpush1.msra.mxu0 %v83
    %183 = vmatprep.subr.mxu0 %v82
    %184 = vmatpush1.msra.mxu0 %v81
    %185 = vmatprep.subr.mxu0 %v80
    %186 = vmatpush1.msra.mxu0 %v79
    %187 = vmatprep.subr.mxu0 %v142
    %188 = vmatpush2.msra.mxu0 %v141
    %189 = vmatprep.subr.mxu0 %v140
    %190 = vmatpush2.msra.mxu0 %v139
    %191 = vmatprep.subr.mxu0 %v138
    %192 = vmatpush2.msra.mxu0 %v137
    %193 = vmatprep.subr.mxu0 %v136
    %194 = vmatpush2.msra.mxu0 %v135
    %195 = vmatprep.subr.mxu0 %v134
    %196 = vmatpush2.msra.mxu0 %v133
    %197 = vmatprep.subr.mxu0 %v132
    %198 = vmatpush2.msra.mxu0 %v131
    %199 = vmatprep.subr.mxu0 %v130
    %200 = vmatpush2.msra.mxu0 %v129
    %201 = vmatprep.subr.mxu0 %v128
    %202 = vmatpush2.msra.mxu0 %v127
    %203 = vmatprep.subr.mxu0 %v126
    %204 = vmatpush2.msra.mxu0 %v125
    %205 = vmatprep.subr.mxu0 %v124
    %206 = vmatpush2.msra.mxu0 %v123
    %207 = vmatprep.subr.mxu0 %v122
    %208 = vmatpush2.msra.mxu0 %v121
    %209 = vmatprep.subr.mxu0 %v120
    %210 = vmatpush2.msra.mxu0 %v119
    %211 = vmatprep.subr.mxu0 %v118
    %212 = vmatpush2.msra.mxu0 %v117
    %213 = vmatprep.subr.mxu0 %v116
    %214 = vmatpush2.msra.mxu0 %v115
    %215 = vmatprep.subr.mxu0 %v114
    %216 = vmatpush2.msra.mxu0 %v113
    %217 = vmatprep.subr.mxu0 %v112
    %218 = vmatpush2.msra.mxu0 %v111
    %219 = vmatprep.mubr.f32.mxu0 %v76
    %220 = vmatmul.mubr.f32.gmra.mxu0 %v75
    %v221 = vpop.f32.mrf.mxu0
    %v222 = vadd.f32 %v148, %v221
    %v223 = vpop.f32.mrf.mxu0
    %v224 = vadd.f32 %v152, %v223
    %225 = vmatprep.mubr.f32.mxu0 %v78
    %226 = vmatmul.mubr.f32.gmra.mxu0 %v77
    %v227 = vpop.f32.mrf.mxu0
    %v228 = vadd.f32 %v148, %v227
    %v229 = vpop.f32.mrf.mxu0
    %v230 = vadd.f32 %v152, %v229
    %231 = vdwg.mxu0
    %v232 = vmax.f32 %v222, 0.0
    %v233 = vmax.f32 %v224, 0.0
    %v234 = vmax.f32 %v228, 0.0
    %v235 = vmax.f32 %v230, 0.0
    %v236 = vld [vmem:[#allocation5] sm:$0xff]
    %v237 = vld [vmem:[#allocation5 + $0x8] sm:$0xff]
    %v238 = vld [vmem:[#allocation5 + $0x10] sm:$0xff]
    %v239 = vld [vmem:[#allocation5 + $0x18] sm:$0xff]
    %v240 = vld [vmem:[#allocation5 + $0x20] sm:$0xff]
    %v241 = vld [vmem:[#allocation5 + $0x28] sm:$0xff]
    %v242 = vld [vmem:[#allocation5 + $0x30] sm:$0xff]
    %v243 = vld [vmem:[#allocation5 + $0x38] sm:$0xff]
    %v244 = vld [vmem:[#allocation5 + $0x40] sm:$0xff]
    %v245 = vld [vmem:[#allocation5 + $0x48] sm:$0xff]
    %v246 = vld [vmem:[#allocation5 + $0x50] sm:$0xff]
    %v247 = vld [vmem:[#allocation5 + $0x58] sm:$0xff]
    %v248 = vld [vmem:[#allocation5 + $0x60] sm:$0xff]
    %v249 = vld [vmem:[#allocation5 + $0x68] sm:$0xff]
    %v250 = vld [vmem:[#allocation5 + $0x70] sm:$0xff]
    %v251 = vld [vmem:[#allocation5 + $0x78] sm:$0xff]
    %v252 = vld [vmem:[#allocation5 + $0x80] sm:$0xff]
    %v253 = vld [vmem:[#allocation5 + $0x88] sm:$0xff]
    %v254 = vld [vmem:[#allocation5 + $0x90] sm:$0xff]
    %v255 = vld [vmem:[#allocation5 + $0x98] sm:$0xff]
    %v256 = vld [vmem:[#allocation5 + $0xa0] sm:$0xff]
    %v257 = vld [vmem:[#allocation5 + $0xa8] sm:$0xff]
    %v258 = vld [vmem:[#allocation5 + $0xb0] sm:$0xff]
    %v259 = vld [vmem:[#allocation5 + $0xb8] sm:$0xff]
    %v260 = vld [vmem:[#allocation5 + $0xc0] sm:$0xff]
    %v261 = vld [vmem:[#allocation5 + $0xc8] sm:$0xff]
    %v262 = vld [vmem:[#allocation5 + $0xd0] sm:$0xff]
    %v263 = vld [vmem:[#allocation5 + $0xd8] sm:$0xff]
    %v264 = vld [vmem:[#allocation5 + $0xe0] sm:$0xff]
    %v265 = vld [vmem:[#allocation5 + $0xe8] sm:$0xff]
    %v266 = vld [vmem:[#allocation5 + $0xf0] sm:$0xff]
    %v267 = vld [vmem:[#allocation5 + $0xf8] sm:$0xff]
    %v268 = vld [vmem:[#allocation5 + $0x100] sm:$0xff]
    %v269 = vld [vmem:[#allocation5 + $0x108] sm:$0xff]
    %v270 = vld [vmem:[#allocation5 + $0x110] sm:$0xff]
    %v271 = vld [vmem:[#allocation5 + $0x118] sm:$0xff]
    %v272 = vld [vmem:[#allocation5 + $0x120] sm:$0xff]
    %v273 = vld [vmem:[#allocation5 + $0x128] sm:$0xff]
    %v274 = vld [vmem:[#allocation5 + $0x130] sm:$0xff]
    %v275 = vld [vmem:[#allocation5 + $0x138] sm:$0xff]
    %v276 = vld [vmem:[#allocation5 + $0x140] sm:$0xff]
    %v277 = vld [vmem:[#allocation5 + $0x148] sm:$0xff]
    %v278 = vld [vmem:[#allocation5 + $0x150] sm:$0xff]
    %v279 = vld [vmem:[#allocation5 + $0x158] sm:$0xff]
    %v280 = vld [vmem:[#allocation5 + $0x160] sm:$0xff]
    %v281 = vld [vmem:[#allocation5 + $0x168] sm:$0xff]
    %v282 = vld [vmem:[#allocation5 + $0x170] sm:$0xff]
    %v283 = vld [vmem:[#allocation5 + $0x178] sm:$0xff]
    %v284 = vld [vmem:[#allocation5 + $0x180] sm:$0xff]
    %v285 = vld [vmem:[#allocation5 + $0x188] sm:$0xff]
    %v286 = vld [vmem:[#allocation5 + $0x190] sm:$0xff]
    %v287 = vld [vmem:[#allocation5 + $0x198] sm:$0xff]
    %v288 = vld [vmem:[#allocation5 + $0x1a0] sm:$0xff]
    %v289 = vld [vmem:[#allocation5 + $0x1a8] sm:$0xff]
    %v290 = vld [vmem:[#allocation5 + $0x1b0] sm:$0xff]
    %v291 = vld [vmem:[#allocation5 + $0x1b8] sm:$0xff]
    %v292 = vld [vmem:[#allocation5 + $0x1c0] sm:$0xff]
    %v293 = vld [vmem:[#allocation5 + $0x1c8] sm:$0xff]
    %v294 = vld [vmem:[#allocation5 + $0x1d0] sm:$0xff]
    %v295 = vld [vmem:[#allocation5 + $0x1d8] sm:$0xff]
    %v296 = vld [vmem:[#allocation5 + $0x1e0] sm:$0xff]
    %v297 = vld [vmem:[#allocation5 + $0x1e8] sm:$0xff]
    %v298 = vld [vmem:[#allocation5 + $0x1f0] sm:$0xff]
    %v299 = vld [vmem:[#allocation5 + $0x1f8] sm:$0xff]
    %v300 = vld [vmem:[%s4] sm:$0x3]
    %v302 = vlaneseq
    %v303 = vshrl.u32 %v302, 7
    %v304 = vsub.s32 0, %v303
    %v305 = vrot.slane %v300, %v304
    %v306 = vlaneseq
    %v307 = vshrl.u32 %v306, 7
    %v308 = vsub.s32 1, %v307
    %v309 = vrot.slane %v300, %v308
    %312 = vmatprep.subr.mxu0 %v267
    %313 = vmatpush1.msra.mxu0 %v266
    %314 = vmatprep.subr.mxu0 %v265
    %315 = vmatpush1.msra.mxu0 %v264
    %316 = vmatprep.subr.mxu0 %v263
    %317 = vmatpush1.msra.mxu0 %v262
    %318 = vmatprep.subr.mxu0 %v261
    %319 = vmatpush1.msra.mxu0 %v260
    %320 = vmatprep.subr.mxu0 %v259
    %321 = vmatpush1.msra.mxu0 %v258
    %322 = vmatprep.subr.mxu0 %v257
    %323 = vmatpush1.msra.mxu0 %v256
    %324 = vmatprep.subr.mxu0 %v255
    %325 = vmatpush1.msra.mxu0 %v254
    %326 = vmatprep.subr.mxu0 %v253
    %327 = vmatpush1.msra.mxu0 %v252
    %328 = vmatprep.subr.mxu0 %v251
    %329 = vmatpush1.msra.mxu0 %v250
    %330 = vmatprep.subr.mxu0 %v249
    %331 = vmatpush1.msra.mxu0 %v248
    %332 = vmatprep.subr.mxu0 %v247
    %333 = vmatpush1.msra.mxu0 %v246
    %334 = vmatprep.subr.mxu0 %v245
    %335 = vmatpush1.msra.mxu0 %v244
    %336 = vmatprep.subr.mxu0 %v243
    %337 = vmatpush1.msra.mxu0 %v242
    %338 = vmatprep.subr.mxu0 %v241
    %339 = vmatpush1.msra.mxu0 %v240
    %340 = vmatprep.subr.mxu0 %v239
    %341 = vmatpush1.msra.mxu0 %v238
    %342 = vmatprep.subr.mxu0 %v237
    %343 = vmatpush1.msra.mxu0 %v236
    %344 = vmatprep.subr.mxu0 %v299
    %345 = vmatpush2.msra.mxu0 %v298
    %346 = vmatprep.subr.mxu0 %v297
    %347 = vmatpush2.msra.mxu0 %v296
    %348 = vmatprep.subr.mxu0 %v295
    %349 = vmatpush2.msra.mxu0 %v294
    %350 = vmatprep.subr.mxu0 %v293
    %351 = vmatpush2.msra.mxu0 %v292
    %352 = vmatprep.subr.mxu0 %v291
    %353 = vmatpush2.msra.mxu0 %v290
    %354 = vmatprep.subr.mxu0 %v289
    %355 = vmatpush2.msra.mxu0 %v288
    %356 = vmatprep.subr.mxu0 %v287
    %357 = vmatpush2.msra.mxu0 %v286
    %358 = vmatprep.subr.mxu0 %v285
    %359 = vmatpush2.msra.mxu0 %v284
    %360 = vmatprep.subr.mxu0 %v283
    %361 = vmatpush2.msra.mxu0 %v282
    %362 = vmatprep.subr.mxu0 %v281
    %363 = vmatpush2.msra.mxu0 %v280
    %364 = vmatprep.subr.mxu0 %v279
    %365 = vmatpush2.msra.mxu0 %v278
    %366 = vmatprep.subr.mxu0 %v277
    %367 = vmatpush2.msra.mxu0 %v276
    %368 = vmatprep.subr.mxu0 %v275
    %369 = vmatpush2.msra.mxu0 %v274
    %370 = vmatprep.subr.mxu0 %v273
    %371 = vmatpush2.msra.mxu0 %v272
    %372 = vmatprep.subr.mxu0 %v271
    %373 = vmatpush2.msra.mxu0 %v270
    %374 = vmatprep.subr.mxu0 %v269
    %375 = vmatpush2.msra.mxu0 %v268
    %376 = vmatprep.mubr.f32.mxu0 %v233
    %377 = vmatmul.mubr.f32.gmra.mxu0 %v232
    %v378 = vpop.f32.mrf.mxu0
    %v379 = vadd.f32 %v305, %v378
    %v380 = vpop.f32.mrf.mxu0
    %v381 = vadd.f32 %v309, %v380
    %382 = vmatprep.mubr.f32.mxu0 %v235
    %383 = vmatmul.mubr.f32.gmra.mxu0 %v234
    %v384 = vpop.f32.mrf.mxu0
    %v385 = vadd.f32 %v305, %v384
    %v386 = vpop.f32.mrf.mxu0
    %v387 = vadd.f32 %v309, %v386
    %388 = vdwg.mxu0
    %v389 = vmax.f32 %v379, 0.0
    %v390 = vmax.f32 %v381, 0.0
    %v391 = vmax.f32 %v385, 0.0
    %v392 = vmax.f32 %v387, 0.0
    %v393 = vld [vmem:[#allocation7] sm:$0xff]
    %v394 = vld [vmem:[#allocation7 + $0x8] sm:$0xff]
    %v395 = vld [vmem:[#allocation7 + $0x10] sm:$0xff]
    %v396 = vld [vmem:[#allocation7 + $0x18] sm:$0xff]
    %v397 = vld [vmem:[#allocation7 + $0x20] sm:$0xff]
    %v398 = vld [vmem:[#allocation7 + $0x28] sm:$0xff]
    %v399 = vld [vmem:[#allocation7 + $0x30] sm:$0xff]
    %v400 = vld [vmem:[#allocation7 + $0x38] sm:$0xff]
    %v401 = vld [vmem:[#allocation7 + $0x40] sm:$0xff]
    %v402 = vld [vmem:[#allocation7 + $0x48] sm:$0xff]
    %v403 = vld [vmem:[#allocation7 + $0x50] sm:$0xff]
    %v404 = vld [vmem:[#allocation7 + $0x58] sm:$0xff]
    %v405 = vld [vmem:[#allocation7 + $0x60] sm:$0xff]
    %v406 = vld [vmem:[#allocation7 + $0x68] sm:$0xff]
    %v407 = vld [vmem:[#allocation7 + $0x70] sm:$0xff]
    %v408 = vld [vmem:[#allocation7 + $0x78] sm:$0xff]
    %v409 = vld [vmem:[#allocation7 + $0x80] sm:$0xff]
    %v410 = vld [vmem:[#allocation7 + $0x88] sm:$0xff]
    %v411 = vld [vmem:[#allocation7 + $0x90] sm:$0xff]
    %v412 = vld [vmem:[#allocation7 + $0x98] sm:$0xff]
    %v413 = vld [vmem:[#allocation7 + $0xa0] sm:$0xff]
    %v414 = vld [vmem:[#allocation7 + $0xa8] sm:$0xff]
    %v415 = vld [vmem:[#allocation7 + $0xb0] sm:$0xff]
    %v416 = vld [vmem:[#allocation7 + $0xb8] sm:$0xff]
    %v417 = vld [vmem:[#allocation7 + $0xc0] sm:$0xff]
    %v418 = vld [vmem:[#allocation7 + $0xc8] sm:$0xff]
    %v419 = vld [vmem:[#allocation7 + $0xd0] sm:$0xff]
    %v420 = vld [vmem:[#allocation7 + $0xd8] sm:$0xff]
    %v421 = vld [vmem:[#allocation7 + $0xe0] sm:$0xff]
    %v422 = vld [vmem:[#allocation7 + $0xe8] sm:$0xff]
    %v423 = vld [vmem:[#allocation7 + $0xf0] sm:$0xff]
    %v424 = vld [vmem:[#allocation7 + $0xf8] sm:$0xff]
    %v425 = vld [vmem:[#allocation7 + $0x100] sm:$0xff]
    %v426 = vld [vmem:[#allocation7 + $0x108] sm:$0xff]
    %v427 = vld [vmem:[#allocation7 + $0x110] sm:$0xff]
    %v428 = vld [vmem:[#allocation7 + $0x118] sm:$0xff]
    %v429 = vld [vmem:[#allocation7 + $0x120] sm:$0xff]
    %v430 = vld [vmem:[#allocation7 + $0x128] sm:$0xff]
    %v431 = vld [vmem:[#allocation7 + $0x130] sm:$0xff]
    %v432 = vld [vmem:[#allocation7 + $0x138] sm:$0xff]
    %v433 = vld [vmem:[#allocation7 + $0x140] sm:$0xff]
    %v434 = vld [vmem:[#allocation7 + $0x148] sm:$0xff]
    %v435 = vld [vmem:[#allocation7 + $0x150] sm:$0xff]
    %v436 = vld [vmem:[#allocation7 + $0x158] sm:$0xff]
    %v437 = vld [vmem:[#allocation7 + $0x160] sm:$0xff]
    %v438 = vld [vmem:[#allocation7 + $0x168] sm:$0xff]
    %v439 = vld [vmem:[#allocation7 + $0x170] sm:$0xff]
    %v440 = vld [vmem:[#allocation7 + $0x178] sm:$0xff]
    %v441 = vld [vmem:[#allocation7 + $0x180] sm:$0xff]
    %v442 = vld [vmem:[#allocation7 + $0x188] sm:$0xff]
    %v443 = vld [vmem:[#allocation7 + $0x190] sm:$0xff]
    %v444 = vld [vmem:[#allocation7 + $0x198] sm:$0xff]
    %v445 = vld [vmem:[#allocation7 + $0x1a0] sm:$0xff]
    %v446 = vld [vmem:[#allocation7 + $0x1a8] sm:$0xff]
    %v447 = vld [vmem:[#allocation7 + $0x1b0] sm:$0xff]
    %v448 = vld [vmem:[#allocation7 + $0x1b8] sm:$0xff]
    %v449 = vld [vmem:[#allocation7 + $0x1c0] sm:$0xff]
    %v450 = vld [vmem:[#allocation7 + $0x1c8] sm:$0xff]
    %v451 = vld [vmem:[#allocation7 + $0x1d0] sm:$0xff]
    %v452 = vld [vmem:[#allocation7 + $0x1d8] sm:$0xff]
    %v453 = vld [vmem:[#allocation7 + $0x1e0] sm:$0xff]
    %v454 = vld [vmem:[#allocation7 + $0x1e8] sm:$0xff]
    %v455 = vld [vmem:[#allocation7 + $0x1f0] sm:$0xff]
    %v456 = vld [vmem:[#allocation7 + $0x1f8] sm:$0xff]
    %v457 = vld [vmem:[%s6] sm:$0x3]
    %v459 = vlaneseq
    %v460 = vshrl.u32 %v459, 7
    %v461 = vsub.s32 0, %v460
    %v462 = vrot.slane %v457, %v461
    %v463 = vlaneseq
    %v464 = vshrl.u32 %v463, 7
    %v465 = vsub.s32 1, %v464
    %v466 = vrot.slane %v457, %v465
    %469 = vmatprep.subr.mxu0 %v424
    %470 = vmatpush1.msra.mxu0 %v423
    %471 = vmatprep.subr.mxu0 %v422
    %472 = vmatpush1.msra.mxu0 %v421
    %473 = vmatprep.subr.mxu0 %v420
    %474 = vmatpush1.msra.mxu0 %v419
    %475 = vmatprep.subr.mxu0 %v418
    %476 = vmatpush1.msra.mxu0 %v417
    %477 = vmatprep.subr.mxu0 %v416
    %478 = vmatpush1.msra.mxu0 %v415
    %479 = vmatprep.subr.mxu0 %v414
    %480 = vmatpush1.msra.mxu0 %v413
    %481 = vmatprep.subr.mxu0 %v412
    %482 = vmatpush1.msra.mxu0 %v411
    %483 = vmatprep.subr.mxu0 %v410
    %484 = vmatpush1.msra.mxu0 %v409
    %485 = vmatprep.subr.mxu0 %v408
    %486 = vmatpush1.msra.mxu0 %v407
    %487 = vmatprep.subr.mxu0 %v406
    %488 = vmatpush1.msra.mxu0 %v405
    %489 = vmatprep.subr.mxu0 %v404
    %490 = vmatpush1.msra.mxu0 %v403
    %491 = vmatprep.subr.mxu0 %v402
    %492 = vmatpush1.msra.mxu0 %v401
    %493 = vmatprep.subr.mxu0 %v400
    %494 = vmatpush1.msra.mxu0 %v399
    %495 = vmatprep.subr.mxu0 %v398
    %496 = vmatpush1.msra.mxu0 %v397
    %497 = vmatprep.subr.mxu0 %v396
    %498 = vmatpush1.msra.mxu0 %v395
    %499 = vmatprep.subr.mxu0 %v394
    %500 = vmatpush1.msra.mxu0 %v393
    %501 = vmatprep.subr.mxu0 %v456
    %502 = vmatpush2.msra.mxu0 %v455
    %503 = vmatprep.subr.mxu0 %v454
    %504 = vmatpush2.msra.mxu0 %v453
    %505 = vmatprep.subr.mxu0 %v452
    %506 = vmatpush2.msra.mxu0 %v451
    %507 = vmatprep.subr.mxu0 %v450
    %508 = vmatpush2.msra.mxu0 %v449
    %509 = vmatprep.subr.mxu0 %v448
    %510 = vmatpush2.msra.mxu0 %v447
    %511 = vmatprep.subr.mxu0 %v446
    %512 = vmatpush2.msra.mxu0 %v445
    %513 = vmatprep.subr.mxu0 %v444
    %514 = vmatpush2.msra.mxu0 %v443
    %515 = vmatprep.subr.mxu0 %v442
    %516 = vmatpush2.msra.mxu0 %v441
    %517 = vmatprep.subr.mxu0 %v440
    %518 = vmatpush2.msra.mxu0 %v439
    %519 = vmatprep.subr.mxu0 %v438
    %520 = vmatpush2.msra.mxu0 %v437
    %521 = vmatprep.subr.mxu0 %v436
    %522 = vmatpush2.msra.mxu0 %v435
    %523 = vmatprep.subr.mxu0 %v434
    %524 = vmatpush2.msra.mxu0 %v433
    %525 = vmatprep.subr.mxu0 %v432
    %526 = vmatpush2.msra.mxu0 %v431
    %527 = vmatprep.subr.mxu0 %v430
    %528 = vmatpush2.msra.mxu0 %v429
    %529 = vmatprep.subr.mxu0 %v428
    %530 = vmatpush2.msra.mxu0 %v427
    %531 = vmatprep.subr.mxu0 %v426
    %532 = vmatpush2.msra.mxu0 %v425
    %533 = vmatprep.mubr.f32.mxu0 %v390
    %534 = vmatmul.mubr.f32.gmra.mxu0 %v389
    %v535 = vpop.f32.mrf.mxu0
    %v536 = vadd.f32 %v462, %v535
    %v537 = vpop.f32.mrf.mxu0
    %v538 = vadd.f32 %v466, %v537
    %539 = vmatprep.mubr.f32.mxu0 %v392
    %540 = vmatmul.mubr.f32.gmra.mxu0 %v391
    %v541 = vpop.f32.mrf.mxu0
    %v542 = vadd.f32 %v462, %v541
    %v543 = vpop.f32.mrf.mxu0
    %v544 = vadd.f32 %v466, %v543
    %545 = vdwg.mxu0
    %v546 = vmax.f32 %v536, 0.0
    %v547 = vmax.f32 %v538, 0.0
    %v548 = vmax.f32 %v542, 0.0
    %v549 = vmax.f32 %v544, 0.0
    %v550 = vld [vmem:[%s7] sm:$0x3]
    %v552 = vlaneseq
    %v553 = vshrl.u32 %v552, 7
    %v554 = vsub.s32 0, %v553
    %v555 = vrot.slane %v550, %v554
    %v556 = vlaneseq
    %v557 = vshrl.u32 %v556, 7
    %v558 = vsub.s32 1, %v557
    %v559 = vrot.slane %v550, %v558
    %v562 = vmul.f32 %v546, %v555
    %v563 = vmul.f32 %v547, %v559
    %v564 = vmul.f32 %v548, %v555
    %v565 = vmul.f32 %v549, %v559
    %v566 = vadd.f32 %v562, %v563
    %567 = vadd.xlane.f32.xlu0 %v566
    %v568 = vpop.xlane.xlu0 %567
    %v569 = vadd.f32 %v564, %v565
    %570 = vadd.xlane.f32.xlu0 %v569
    %v571 = vpop.xlane.xlu0 %570
    %v572 = vld [vmem:[#allocation2] sm:$0x1]
    %v574 = vlaneseq
    %v575 = vshrl.u32 %v574, 7
    %v576 = vsub.s32 0, %v575
    %v577 = vrot.slane %v572, %v576
    %v579 = vadd.f32 %v568, %v577
    %v580 = vadd.f32 %v571, %v577
    %vm581 = vcmask 7168
    %582 = vst.msk [vmem:[%s9] sm:$0xff] %vm581, %v579
    %583 = vst.msk [vmem:[%s9 + $0x8] sm:$0xff] %vm581, %v580
    // Predicated region
    $region50: #{value_network_forward.1} parent=1 // pred_check
      _
    $region51: #{value_network_forward.1} parent=1 // pred_check_branch
      %585 = sbr.rel (0) target = $region53
    $region52: #{value_network_forward.1} parent=1 // pred_region
      _
    $region53: #{value_network_forward.1} parent=1 // pred_fallthru
      _
    // Predicated region
    $region54: #{value_network_forward.1} parent=1 // pred_check
      _
    $region55: #{value_network_forward.1} parent=1 // pred_check_branch
      %587 = sbr.rel (0) target = $region57
    $region56: #{value_network_forward.1} parent=1 // pred_region
      _
    $region57: #{value_network_forward.1} parent=1 // pred_fallthru
      _
    %588 = vsyncpa [#allocation4], 1
    %589 = vsyncpa [#allocation6], 1

</llo_original>
